<compile_context>
chip_gen: v7x
topology: tpu7x:2x2x1
jax: 0.10.0
libtpu: 0.0.40
codegen_flags: <defaults>
</compile_context>

<pallas_src>
import functools

import jax
import jax.numpy as jnp
from jax.experimental import pallas as pl
from jax.experimental.pallas import tpu as pltpu


def _ceil_div(a, b):
    return -(-a // b)


def _round_up(a, b):
    return _ceil_div(a, b) * b


def _sublane_multiple(dtype):
    """Rows per physical sublane tile for this dtype (8 f32, 16 bf16, 32 i8)."""
    return max(8, 32 // jnp.dtype(dtype).itemsize)


def _budgets(tile_bytes):
    """(tile_bytes, vmem_limit_bytes), chip-aware when tile_bytes is None."""
    vmem_limit = 32 * 1024 * 1024          # safe default everywhere (incl. v7x)
    auto_tile = 2 * 1024 * 1024
    try:
        info = pltpu.get_tpu_info()
        vmem_cap = getattr(info, "vmem_capacity_bytes", None)
        if vmem_cap is not None and vmem_cap >= (100 << 20):
            # v5e / v6e: 128 MiB physical VMEM -> bigger tiles, bigger limit.
            auto_tile = 4 * 1024 * 1024
            vmem_limit = 64 * 1024 * 1024
    except Exception:
        pass
    if tile_bytes is None:
        tile_bytes = auto_tile
    return tile_bytes, vmem_limit


# --------------------------------------------------------------------------
# Kernels
# --------------------------------------------------------------------------

def _kl_common(s, t, inv_tau, axis):
    """Per-position KL(T || S) reduced over `axis` (numerically stable).

       pos_kl = sum_c softT * (log softT - log softS)
              = (sum_c t_exp * (t_sh - s_sh)) / t_sum + log(s_sum) - log(t_sum)
    """
    s = s.astype(jnp.float32)
    t = t.astype(jnp.float32)
    if inv_tau != 1.0:
        s = s * jnp.float32(inv_tau)
        t = t * jnp.float32(inv_tau)

    t_max = jnp.max(t, axis=axis, keepdims=True)
    t_sh = t - t_max
    t_exp = jnp.exp(t_sh)
    t_sum = jnp.sum(t_exp, axis=axis, keepdims=True)

    s_max = jnp.max(s, axis=axis, keepdims=True)
    s_sh = s - s_max
    s_sum = jnp.sum(jnp.exp(s_sh), axis=axis, keepdims=True)

    num = jnp.sum(t_exp * (t_sh - s_sh), axis=axis, keepdims=True)
    return num / t_sum + (jnp.log(s_sum) - jnp.log(t_sum))


def _kl_div_chw_batch_kernel(s_ref, t_ref, out_ref, *, inv_tau):
    """4D batched path: (tn, C, L) tile, full spatial extent per image.
    Classes live on sublanes (axis 1), positions on lanes.  The whole tile's
    KL sum is written directly to a lane-dense (1, 8, 128) output block —
    no accumulator scratch, no init/finalize phases."""
    pos_kl = _kl_common(s_ref[...], t_ref[...], inv_tau, axis=1)   # (tn, 1, L)
    # Zero-padded positions / padded batch images contribute exactly 0
    # (identical uniform softmaxes for S and T), so no mask is needed.
    out_ref[...] = jnp.broadcast_to(jnp.sum(pos_kl), out_ref.shape)


def _kl_div_chw_acc_kernel(s_ref, t_ref, out_ref, acc_ref, *, inv_tau):
    """4D spatial-tiled path (one image's (C, HW) slab exceeds the budget).
    One grid step sees a (1, C, t_hw) tile; per-position KL accumulates into
    a (1, t_hw) f32 VMEM scratch; the scalar collapse happens once, on the
    last step of the ('arbitrary') reduction axis."""
    j = pl.program_id(1)

    @pl.when(j == 0)
    def _init():
        acc_ref[...] = jnp.zeros_like(acc_ref)

    pos_kl = _kl_common(s_ref[0], t_ref[0], inv_tau, axis=0)       # (1, t_hw)
    acc_ref[...] += pos_kl

    @pl.when(j == pl.num_programs(1) - 1)
    def _finalize():
        out_ref[...] = jnp.broadcast_to(jnp.sum(acc_ref[...]), out_ref.shape)


def _kl_div_rows_kernel(s_ref, t_ref, out_ref, *, inv_tau):
    """2D path: (tm, C) tile (classes on lanes); partial KL sum broadcast
    over a lane-dense (1, 8, 128) output tile."""
    row_kl = _kl_common(s_ref[...], t_ref[...], inv_tau, axis=-1)  # (tm, 1)
    out_ref[...] = jnp.broadcast_to(jnp.sum(row_kl), out_ref.shape)


# --------------------------------------------------------------------------
# Wrappers
# --------------------------------------------------------------------------

def _kl_sum_4d(preds_S, preds_T, inv_tau, tile_bytes, vmem_limit):
    """Sum of KL(T || S) over all (n, h, w) positions for NCHW inputs."""
    N, C, H, W = preds_S.shape
    HW = H * W
    itemsize = jnp.dtype(preds_S.dtype).itemsize
    sub = _sublane_multiple(preds_S.dtype)
    C_phys = _round_up(C, sub)                      # physical sublane footprint

    HW_pad_full = _round_up(HW, 128)
    bytes_per_image = C_phys * HW_pad_full * itemsize

    s = preds_S.reshape(N, C, HW)                   # reshape only — no transpose pass
    t = preds_T.reshape(N, C, HW)

    if bytes_per_image <= tile_bytes:
        # ---- Batched path: full spatial per image, tn images per step ----
        tn = max(1, min(N, tile_bytes // bytes_per_image))
        n_outer = _ceil_div(N, tn)
        if n_outer == 1 and N > 1:
            # Give v7x's second TensorCore work on the 'parallel' axis.
            tn = _ceil_div(N, 2)
            n_outer = 2
        N_pad = tn * n_outer

        pad = ((0, N_pad - N), (0, 0), (0, HW_pad_full - HW))
        if N_pad != N or HW_pad_full != HW:
            s = jnp.pad(s, pad)
            t = jnp.pad(t, pad)

        kernel = functools.partial(_kl_div_chw_batch_kernel, inv_tau=inv_tau)
        partials = pl.pallas_call(
            kernel,
            out_shape=jax.ShapeDtypeStruct((n_outer, 8, 128), jnp.float32),
            grid_spec=pltpu.PrefetchScalarGridSpec(
                num_scalar_prefetch=0,
                grid=(n_outer,),
                in_specs=[
                    pl.BlockSpec((tn, C, HW_pad_full), lambda i: (i, 0, 0)),
                    pl.BlockSpec((tn, C, HW_pad_full), lambda i: (i, 0, 0)),
                ],
                out_specs=pl.BlockSpec((1, 8, 128), lambda i: (i, 0, 0)),
            ),
            compiler_params=pltpu.CompilerParams(
                dimension_semantics=("parallel",),
                vmem_limit_bytes=vmem_limit),
        )(s, t)
        return jnp.sum(partials[:, 0, 0])

    # ---- Spatial-tiled path: one image's slab exceeds the tile budget ----
    target_elems = max(128, (tile_bytes // (C_phys * itemsize)) // 128 * 128)
    n_blocks = max(1, _ceil_div(HW, target_elems))

    # Give v7x's second TensorCore work even when N == 1 by splitting the
    # spatial reduction into P parallel slabs, each with its own partial sum.
    # TODO(synk): extend the even-split to odd N > 1 (minor v7x-only gain).
    P = 1
    if N == 1 and n_blocks >= 2:
        P = 2
        n_blocks = _ceil_div(n_blocks, 2) * 2

    t_hw = _round_up(_ceil_div(HW, n_blocks), 128)
    HW_pad = t_hw * n_blocks
    J = n_blocks // P
    G = N * P

    if HW_pad != HW:
        pad = ((0, 0), (0, 0), (0, HW_pad - HW))
        s = jnp.pad(s, pad)
        t = jnp.pad(t, pad)

    kernel = functools.partial(_kl_div_chw_acc_kernel, inv_tau=inv_tau)
    in_map = lambda g, j, P=P, J=J: (g // P, 0, (g % P) * J + j)

    partials = pl.pallas_call(
        kernel,
        out_shape=jax.ShapeDtypeStruct((G, 8, 128), jnp.float32),
        grid_spec=pltpu.PrefetchScalarGridSpec(
            num_scalar_prefetch=0,
            grid=(G, J),
            in_specs=[
                pl.BlockSpec((1, C, t_hw), in_map),
                pl.BlockSpec((1, C, t_hw), in_map),
            ],
            out_specs=pl.BlockSpec((1, 8, 128), lambda g, j: (g, 0, 0)),
            scratch_shapes=[pltpu.VMEM((1, t_hw), jnp.float32)],
        ),
        compiler_params=pltpu.CompilerParams(
            dimension_semantics=("parallel", "arbitrary"),
            vmem_limit_bytes=vmem_limit),
    )(s, t)

    return jnp.sum(partials[:, 0, 0])


def _kl_sum_2d(preds_S, preds_T, inv_tau, tile_bytes, vmem_limit):
    """Sum of KL(T || S) over all rows for (M, C) inputs."""
    M, C = preds_S.shape
    itemsize = jnp.dtype(preds_S.dtype).itemsize
    sub = _sublane_multiple(preds_S.dtype)
    C_lanes = _round_up(C, 128)                     # physical lane footprint
    bytes_per_row = C_lanes * itemsize

    target_rows = max(sub, (tile_bytes // bytes_per_row) // sub * sub)
    n_blocks = max(1, _ceil_div(M, target_rows))
    if n_blocks == 1 and M >= 2 * sub:
        n_blocks = 2                                # both v7x cores get work
    tm = _round_up(_ceil_div(M, n_blocks), sub)
    M_pad = tm * n_blocks

    s, t = preds_S, preds_T
    if M_pad != M:
        pad = ((0, M_pad - M), (0, 0))
        s = jnp.pad(s, pad)
        t = jnp.pad(t, pad)

    kernel = functools.partial(_kl_div_rows_kernel, inv_tau=inv_tau)

    partials = pl.pallas_call(
        kernel,
        out_shape=jax.ShapeDtypeStruct((n_blocks, 8, 128), jnp.float32),
        grid_spec=pltpu.PrefetchScalarGridSpec(
            num_scalar_prefetch=0,
            grid=(n_blocks,),
            in_specs=[
                pl.BlockSpec((tm, C), lambda i: (i, 0)),
                pl.BlockSpec((tm, C), lambda i: (i, 0)),
            ],
            out_specs=pl.BlockSpec((1, 8, 128), lambda i: (i, 0, 0)),
        ),
        compiler_params=pltpu.CompilerParams(
            dimension_semantics=("parallel",),
            vmem_limit_bytes=vmem_limit),
    )(s, t)

    return jnp.sum(partials[:, 0, 0])


def kl_divergence_loss(preds_S, preds_T, *, tau=1.0, reduction='batchmean',
                       loss_weight=1.0, tile_bytes=None):
    """Pallas implementation of mmrazor KLDivergence.forward (C > 1 path)."""
    assert preds_S.ndim in (2, 4)
    assert preds_S.shape == preds_T.shape
    assert reduction in ('none', 'batchmean', 'sum', 'mean')

    num_classes = preds_S.shape[1]
    if num_classes == 1:
        # TODO(synk): binary (C == 1) sigmoid path of the reference module not implemented.
        raise NotImplementedError("C == 1 sigmoid path not implemented")
    if reduction == 'none':
        # TODO(synk): 'none' reduction returns an elementwise tensor; only scalar reductions here.
        raise NotImplementedError("'none' reduction not implemented")

    tile_bytes, vmem_limit = _budgets(tile_bytes)
    inv_tau = float(1.0 / tau)

    if preds_S.ndim == 4:
        N, C, H, W = preds_S.shape
        m_rows = N * H * W   # rows after the reference transpose(1,3).reshape(-1, C)
        kl_sum = _kl_sum_4d(preds_S, preds_T, inv_tau, tile_bytes, vmem_limit)
    else:
        m_rows, C = preds_S.shape
        kl_sum = _kl_sum_2d(preds_S, preds_T, inv_tau, tile_bytes, vmem_limit)

    if reduction == 'batchmean':
        loss = kl_sum / m_rows
    elif reduction == 'mean':
        loss = kl_sum / (m_rows * C)
    else:  # 'sum'
        loss = kl_sum

    return loss_weight * (tau ** 2) * loss


# --------------------------------------------------------------------------
# Pure-JAX reference + self-test
# --------------------------------------------------------------------------

def _reference(preds_S, preds_T, tau=1.0, reduction='batchmean', loss_weight=1.0):
    """Pure-JAX reference mirroring the PyTorch module (C > 1 path)."""
    if preds_S.ndim == 4:
        C = preds_S.shape[1]
        preds_S = jnp.transpose(preds_S, (0, 3, 2, 1)).reshape(-1, C)
        preds_T = jnp.transpose(preds_T, (0, 3, 2, 1)).reshape(-1, C)
    M, C = preds_S.shape
    t_soft = jax.nn.softmax(preds_T.astype(jnp.float32) / tau, axis=1)
    log_s = jax.nn.log_softmax(preds_S.astype(jnp.float32) / tau, axis=1)
    pointwise = t_soft * (jnp.log(t_soft) - log_s)
    s = jnp.sum(pointwise)
    if reduction == 'batchmean':
        s = s / M
    elif reduction == 'mean':
        s = s / (M * C)
    return loss_weight * (tau ** 2) * s


if __name__ == "__main__":
    key = jax.random.PRNGKey(0)
    k1, k2, k3, k4, k5, k6 = jax.random.split(key, 6)

    # --- main 4D NCHW case (N, C, H, W): batched path, 2 parallel blocks ---
    preds_S = jax.random.normal(k1, (2, 4, 16, 16), dtype=jnp.float32)
    preds_T = jax.random.normal(k2, (2, 4, 16, 16), dtype=jnp.float32)
    tau = 2.0
    loss = kl_divergence_loss(preds_S, preds_T, tau=tau,
                              reduction='batchmean', loss_weight=1.0)
    loss = jax.block_until_ready(loss)
    ref = _reference(preds_S, preds_T, tau=tau,
                     reduction='batchmean', loss_weight=1.0)
    assert jnp.allclose(loss, ref, rtol=1e-5, atol=1e-5), (loss, ref)

    # --- 2D (N, C) case ---
    s2 = jax.random.normal(k3, (8, 32), dtype=jnp.float32)
    t2 = jax.random.normal(k4, (8, 32), dtype=jnp.float32)
    loss2 = jax.block_until_ready(
        kl_divergence_loss(s2, t2, tau=1.0, reduction='mean'))
    ref2 = _reference(s2, t2, tau=1.0, reduction='mean')
    assert jnp.allclose(loss2, ref2, rtol=1e-5, atol=1e-5), (loss2, ref2)

    # --- 4D, N=1, non-128-multiple spatial size, tiny tile budget: forces
    #     the spatial-tiled accumulator path, the parallel split and padding ---
    s3 = jax.random.normal(k5, (1, 4, 18, 18), dtype=jnp.float32)
    t3 = jax.random.normal(k6, (1, 4, 18, 18), dtype=jnp.float32)
    loss3 = jax.block_until_ready(
        kl_divergence_loss(s3, t3, tau=1.5, reduction='sum', tile_bytes=2048))
    ref3 = _reference(s3, t3, tau=1.5, reduction='sum')
    assert jnp.allclose(loss3, ref3, rtol=1e-5, atol=1e-4), (loss3, ref3)

    # --- 2D, multi-block with row padding ---
    s4 = jax.random.normal(k1, (20, 32), dtype=jnp.float32)
    t4 = jax.random.normal(k2, (20, 32), dtype=jnp.float32)
    loss4 = jax.block_until_ready(
        kl_divergence_loss(s4, t4, tau=1.0, reduction='batchmean', tile_bytes=512))
    ref4 = _reference(s4, t4, tau=1.0, reduction='batchmean')
    assert jnp.allclose(loss4, ref4, rtol=1e-5, atol=1e-5), (loss4, ref4)

    # --- 4D, odd N: batched path with multiple images per step + batch padding ---
    s5 = jax.random.normal(k3, (3, 4, 16, 16), dtype=jnp.float32)
    t5 = jax.random.normal(k4, (3, 4, 16, 16), dtype=jnp.float32)
    loss5 = jax.block_until_ready(
        kl_divergence_loss(s5, t5, tau=1.0, reduction='batchmean',
                           tile_bytes=65536))
    ref5 = _reference(s5, t5, tau=1.0, reduction='batchmean')
    assert jnp.allclose(loss5, ref5, rtol=1e-5, atol=1e-5), (loss5, ref5)

    print("KERNEL_OK")
</pallas_src>

<mosaic_0001>
module attributes {stable_mosaic.version = 11 : i64} {
  func.func @_kl_div_chw_batch_kernel(%arg0: i32, %arg1: memref<1x4x256xf32, #tpu.memory_space<vmem>>, %arg2: memref<1x4x256xf32, #tpu.memory_space<vmem>>, %arg3: memref<1x8x128xf32, #tpu.memory_space<vmem>>) attributes {dimension_semantics = [#tpu.dimension_semantics<parallel>], iteration_bounds = array<i64: 2>, scalar_prefetch = 0 : i64, scratch_operands = 0 : i64, tpu.core_type = #tpu.core_type<tc>, window_params = [{transform_indices = @transform_0, window_bounds = array<i64: 1, 4, 256>}, {transform_indices = @transform_1, window_bounds = array<i64: 1, 4, 256>}, {transform_indices = @transform_2, window_bounds = array<i64: 1, 8, 128>}]} {
    %c0 = arith.constant 0 : index
    %c0_0 = arith.constant 0 : index
    %c0_1 = arith.constant 0 : index
    %0 = vector.load %arg1[%c0, %c0_0, %c0_1] : memref<1x4x256xf32, #tpu.memory_space<vmem>>, vector<1x4x256xf32>
    %c0_2 = arith.constant 0 : index
    %c0_3 = arith.constant 0 : index
    %c0_4 = arith.constant 0 : index
    %1 = vector.load %arg2[%c0_2, %c0_3, %c0_4] : memref<1x4x256xf32, #tpu.memory_space<vmem>>, vector<1x4x256xf32>
    %cst = arith.constant 5.000000e-01 : f32
    %2 = vector.broadcast %cst : f32 to vector<1x4x256xf32>
    %3 = arith.mulf %0, %2 : vector<1x4x256xf32>
    %cst_5 = arith.constant 5.000000e-01 : f32
    %4 = vector.broadcast %cst_5 : f32 to vector<1x4x256xf32>
    %5 = arith.mulf %1, %4 : vector<1x4x256xf32>
    %cst_6 = arith.constant dense<0xFF800000> : vector<1x256xf32>
    %6 = vector.multi_reduction <maximumf>, %5, %cst_6 [1] : vector<1x4x256xf32> to vector<1x256xf32>
    %7 = vector.shape_cast %6 : vector<1x256xf32> to vector<1x1x256xf32>
    %8 = vector.broadcast %7 : vector<1x1x256xf32> to vector<1x4x256xf32>
    %9 = arith.subf %5, %8 : vector<1x4x256xf32>
    %10 = math.exp %9 : vector<1x4x256xf32>
    %cst_7 = arith.constant dense<0.000000e+00> : vector<1x256xf32>
    %11 = vector.multi_reduction <add>, %10, %cst_7 [1] : vector<1x4x256xf32> to vector<1x256xf32>
    %12 = vector.shape_cast %11 : vector<1x256xf32> to vector<1x1x256xf32>
    %cst_8 = arith.constant dense<0xFF800000> : vector<1x256xf32>
    %13 = vector.multi_reduction <maximumf>, %3, %cst_8 [1] : vector<1x4x256xf32> to vector<1x256xf32>
    %14 = vector.shape_cast %13 : vector<1x256xf32> to vector<1x1x256xf32>
    %15 = vector.broadcast %14 : vector<1x1x256xf32> to vector<1x4x256xf32>
    %16 = arith.subf %3, %15 : vector<1x4x256xf32>
    %17 = math.exp %16 : vector<1x4x256xf32>
    %cst_9 = arith.constant dense<0.000000e+00> : vector<1x256xf32>
    %18 = vector.multi_reduction <add>, %17, %cst_9 [1] : vector<1x4x256xf32> to vector<1x256xf32>
    %19 = vector.shape_cast %18 : vector<1x256xf32> to vector<1x1x256xf32>
    %20 = arith.subf %9, %16 : vector<1x4x256xf32>
    %21 = arith.mulf %10, %20 : vector<1x4x256xf32>
    %cst_10 = arith.constant dense<0.000000e+00> : vector<1x256xf32>
    %22 = vector.multi_reduction <add>, %21, %cst_10 [1] : vector<1x4x256xf32> to vector<1x256xf32>
    %23 = vector.shape_cast %22 : vector<1x256xf32> to vector<1x1x256xf32>
    %24 = arith.divf %23, %12 : vector<1x1x256xf32>
    %25 = math.log %19 : vector<1x1x256xf32>
    %26 = math.log %12 : vector<1x1x256xf32>
    %27 = arith.subf %25, %26 : vector<1x1x256xf32>
    %28 = arith.addf %24, %27 : vector<1x1x256xf32>
    %29 = vector.shape_cast %28 : vector<1x1x256xf32> to vector<1x1x1x256xf32>
    %cst_11 = arith.constant dense<0.000000e+00> : vector<1xf32>
    %30 = vector.multi_reduction <add>, %29, %cst_11 [1, 2, 3] : vector<1x1x1x256xf32> to vector<1xf32>
    %31 = vector.shape_cast %30 : vector<1xf32> to vector<1x1x1x1xf32>
    %32 = vector.extract %31[0, 0, 0, 0] : f32 from vector<1x1x1x1xf32>
    %33 = vector.broadcast %32 : f32 to vector<1x8x128xf32>
    %c0_12 = arith.constant 0 : index
    %c0_13 = arith.constant 0 : index
    %c0_14 = arith.constant 0 : index
    %34 = vector.load %arg3[%c0_12, %c0_13, %c0_14] : memref<1x8x128xf32, #tpu.memory_space<vmem>>, vector<1x8x128xf32>
    tpu.vector_store %arg3[%c0_12, %c0_13, %c0_14], %33 {strides = array<i32>} : memref<1x8x128xf32, #tpu.memory_space<vmem>>, vector<1x8x128xf32>,
    return
  }
  func.func @transform_0(%arg0: i32) -> (i32, i32, i32) {
    %c0_i32 = arith.constant 0 : i32
    %c0_i32_0 = arith.constant 0 : i32
    %c0_i32_1 = arith.constant 0 : i32
    return %arg0, %c0_i32, %c0_i32_0 : i32, i32, i32
  }
  func.func @transform_1(%arg0: i32) -> (i32, i32, i32) {
    %c0_i32 = arith.constant 0 : i32
    %c0_i32_0 = arith.constant 0 : i32
    %c0_i32_1 = arith.constant 0 : i32
    return %arg0, %c0_i32, %c0_i32_0 : i32, i32, i32
  }
  func.func @transform_2(%arg0: i32) -> (i32, i32, i32) {
    %c0_i32 = arith.constant 0 : i32
    %c0_i32_0 = arith.constant 0 : i32
    %c0_i32_1 = arith.constant 0 : i32
    return %arg0, %c0_i32, %c0_i32_0 : i32, i32, i32
  }
}

</mosaic_0001>

<llo_original>
// kernel: tpu_custom_call.1
$region0: #{tpu_custom_call.1}
  #allocation0 [shape = 'u32[]', space=smem, size = 0x4, offset = 0x4, fixed_abs, tag = 'smem constant byte address 0x4 - core index']
  #allocation1 [shape = 'u32[144,128]{1,0:T(1,128)}', space=vmem, size = 0x12000, scoped, tag = 'internal scratch']
  %s0 = inlined_call_operand.hbm [shape: f32[2,4,256], index: 0, kind: input, shape index: {}]
  %s1 = inlined_call_operand.hbm [shape: f32[2,4,256], index: 1, kind: input, shape index: {}]
  %s2 = inlined_call_operand.hbm [shape: f32[2,8,128], index: 2, kind: output, shape index: {}]
  %s3 = sld [smem:[#allocation0]]
  $region49: #{tpu_custom_call.1} parent=0
    _
  %s5 = ssub.s32 1, %s3
  %s6 = scalar_select 0, %s5, %s3
  $region1: #{tpu_custom_call.1} parent=0
    #allocation2 [shape = 'u8[8192]{0}', space=vmem, size = 0x2000, scoped, tag = 'input window, operand 0']
    #allocation3 [shape = 's32[2]{0}', space=sflag, size = 0x8, scoped, tag = 'scoped memory for tpu_custom_call.1']
    #allocation4 [shape = 's32[2]{0}', space=sflag, size = 0x8, scoped, tag = 'scoped memory for tpu_custom_call.1']
    #allocation5 [shape = 'u8[8192]{0}', space=vmem, size = 0x2000, scoped, tag = 'input window, operand 1']
    #allocation6 [shape = 's32[2]{0}', space=sflag, size = 0x8, scoped, tag = 'scoped memory for tpu_custom_call.1']
    #allocation7 [shape = 'u8[8192]{0}', space=vmem, size = 0x2000, scoped, tag = 'output window, operand 0']
    %7 = vsyncpa [#allocation3], 0
    %s8 = scalar_lea.sflag [#allocation3], 1
    %9 = vsyncpa %s8, 0
    %10 = vsyncpa [#allocation6], 0
    %s11 = scalar_lea.sflag [#allocation6], 1
    %12 = vsyncpa %s11, 0
    %13 = vsyncpa [#allocation4], 0
    %s14 = scalar_lea.sflag [#allocation4], 1
    %15 = vsyncpa %s14, 0
    loop: start=0, step=1, limit=4
    $region2: #{tpu_custom_call.1} parent=1 // loop_pre_header
      _
    $region3: #{tpu_custom_call.1} parent=1 // loop_header
      %s17 = sphi 0, %s21
      %p18 = scmp.ge.s32.totalorder %s17, 4
      %s27 = sphi 0, %s29
      %s30 = sphi 0, %s27
      %s31 = sphi 0, %s30
      %s47 = sphi 0, %s31
      %s53 = sphi 0, %s55
      %s56 = sphi 0, %s53
      %s57 = sphi 0, %s56
      %s73 = sphi 0, %s57
      %s79 = sphi 0, %s81
      %s82 = sphi 0, %s79
      %s83 = sphi 0, %s82
      %s99 = sphi 0, %s83
    $region4: #{tpu_custom_call.1} parent=1 // loop_header_branch
      %20 = sbr.rel (%p18) target = $region8
    $region5: #{tpu_custom_call.1} parent=1 // loop_body
      %s22 = ssub.s32 %s17, 1
      %s23 = ssub.s32 %s17, 2
      %s24 = sadd.s32 %s17, 1
      %s25 = ssub.s32 %s17, %s24
      %p26 = scmp.eq.s32.totalorder %s25, 0
      %s28 = sadd.s32 %s27, 1
      %s29 = scalar_select %p26, %s27, %s28
      %p32 = pneg %p26
      %p33 = scmp.eq.s32.totalorder %s17, 1
      %p34 = por %p32, %p33
      %p35 = scmp.ne.s32.totalorder %s27, %s30
      %p36 = scmp.eq.s32.totalorder %s17, 0
      %p37 = por %p35, %p36
      %p38 = scmp.ne.s32.totalorder %s27, %s30
      %p39 = scmp.eq.s32.totalorder %s22, 1
      %p40 = por %p38, %p39
      %p41 = scmp.ne.s32.totalorder %s30, %s31
      %p42 = scmp.eq.s32.totalorder %s22, 0
      %p43 = por %p41, %p42
      %p44 = scmp.ne.s32.totalorder %s30, %s31
      %p45 = scmp.eq.s32.totalorder %s23, 1
      %p46 = por %p44, %p45
      %p48 = scmp.ne.s32.totalorder %s31, %s47
      %p49 = scmp.eq.s32.totalorder %s23, 0
      %p50 = por %p48, %p49
      %s51 = ssub.s32 %s17, %s24
      %p52 = scmp.eq.s32.totalorder %s51, 0
      %s54 = sadd.s32 %s53, 1
      %s55 = scalar_select %p52, %s53, %s54
      %p58 = pneg %p52
      %p59 = scmp.eq.s32.totalorder %s17, 1
      %p60 = por %p58, %p59
      %p61 = scmp.ne.s32.totalorder %s53, %s56
      %p62 = scmp.eq.s32.totalorder %s17, 0
      %p63 = por %p61, %p62
      %p64 = scmp.ne.s32.totalorder %s53, %s56
      %p65 = scmp.eq.s32.totalorder %s22, 1
      %p66 = por %p64, %p65
      %p67 = scmp.ne.s32.totalorder %s56, %s57
      %p68 = scmp.eq.s32.totalorder %s22, 0
      %p69 = por %p67, %p68
      %p70 = scmp.ne.s32.totalorder %s56, %s57
      %p71 = scmp.eq.s32.totalorder %s23, 1
      %p72 = por %p70, %p71
      %p74 = scmp.ne.s32.totalorder %s57, %s73
      %p75 = scmp.eq.s32.totalorder %s23, 0
      %p76 = por %p74, %p75
      %s77 = ssub.s32 %s17, %s24
      %p78 = scmp.eq.s32.totalorder %s77, 0
      %s80 = sadd.s32 %s79, 1
      %s81 = scalar_select %p78, %s79, %s80
      %p84 = pneg %p78
      %p85 = scmp.eq.s32.totalorder %s17, 1
      %p86 = por %p84, %p85
      %p87 = scmp.ne.s32.totalorder %s79, %s82
      %p88 = scmp.eq.s32.totalorder %s17, 0
      %p89 = por %p87, %p88
      %p90 = scmp.ne.s32.totalorder %s79, %s82
      %p91 = scmp.eq.s32.totalorder %s22, 1
      %p92 = por %p90, %p91
      %p93 = scmp.ne.s32.totalorder %s82, %s83
      %p94 = scmp.eq.s32.totalorder %s22, 0
      %p95 = por %p93, %p94
      %p96 = scmp.ne.s32.totalorder %s82, %s83
      %p97 = scmp.eq.s32.totalorder %s23, 1
      %p98 = por %p96, %p97
      %p100 = scmp.ne.s32.totalorder %s83, %s99
      %p101 = scmp.eq.s32.totalorder %s23, 0
      %p102 = por %p100, %p101
      %p103 = scmp.le.s32.totalorder 1, %s17
      %p104 = scmp.lt.s32.totalorder %s17, 3
      %p105 = pnand %p103, %p104
      %p106 = pneg %p105
      // Predicated region
      $region9: #{tpu_custom_call.1} parent=5 // pred_check
        _
      $region10: #{tpu_custom_call.1} parent=5 // pred_check_branch
        %108 = sbr.rel (%p105) target = $region12
      $region11: #{tpu_custom_call.1} parent=5 // pred_region
        %s109 = ssub.s32 %s17, 1
      $region12: #{tpu_custom_call.1} parent=5 // pred_fallthru
        _
      %p110 = scmp.lt.s32.totalorder %s17, 2
      // Predicated region
      $region13: #{tpu_custom_call.1} parent=5 // pred_check
        %p111 = pneg %p110
      $region14: #{tpu_custom_call.1} parent=5 // pred_check_branch
        %113 = sbr.rel (%p111) target = $region16
      $region15: #{tpu_custom_call.1} parent=5 // pred_region
        // Predicated region
        $region17: #{tpu_custom_call.1} parent=15 // pred_check
          %p114 = pneg %p37
        $region18: #{tpu_custom_call.1} parent=15 // pred_check_branch
          %116 = sbr.rel (%p114) target = $region20
        $region19: #{tpu_custom_call.1} parent=15 // pred_region
          %s117 = sand.u32 %s27, 1
          %s118 = scalar_lea.sflag [#allocation3], %s117
          %s119 = sand.u32 %s27, 1
          %s120 = smul.addr %s119, 8
          %s121 = scalar_lea.vmem [#allocation2], %s120
          %s123 = ssub.s32 128, 128
          %124 = vsyncadd %s118, %s123
          %s125 = smul.addr %s17, 2
          %s126 = smul.addr %s125, 64
          %s127 = scalar_lea.hbm %s0, %s126
          %s129 = sshll.u32 %s121, 4
          %s130 = int_to_ptr.vmem [resolvable:$true] %s129
          %132 = dma.hbm_to_vmem [thread:$0]  %s127, 128, %s130, %s118
        $region20: #{tpu_custom_call.1} parent=15 // pred_fallthru
          _
        // Predicated region
        $region21: #{tpu_custom_call.1} parent=15 // pred_check
          %p133 = pneg %p63
        $region22: #{tpu_custom_call.1} parent=15 // pred_check_branch
          %135 = sbr.rel (%p133) target = $region24
        $region23: #{tpu_custom_call.1} parent=15 // pred_region
          %s136 = sand.u32 %s53, 1
          %s137 = scalar_lea.sflag [#allocation6], %s136
          %s138 = sand.u32 %s53, 1
          %s139 = smul.addr %s138, 8
          %s140 = scalar_lea.vmem [#allocation5], %s139
          %s142 = ssub.s32 128, 128
          %143 = vsyncadd %s137, %s142
          %s144 = smul.addr %s17, 2
          %s145 = smul.addr %s144, 64
          %s146 = scalar_lea.hbm %s1, %s145
          %s148 = sshll.u32 %s140, 4
          %s149 = int_to_ptr.vmem [resolvable:$true] %s148
          %151 = dma.hbm_to_vmem [thread:$0]  %s146, 128, %s149, %s137
        $region24: #{tpu_custom_call.1} parent=15 // pred_fallthru
          _
      $region16: #{tpu_custom_call.1} parent=5 // pred_fallthru
        _
      %p152 = scmp.le.s32.totalorder 1, %s17
      %p153 = scmp.lt.s32.totalorder %s17, 3
      %p154 = pnand %p152, %p153
      %p155 = pneg %p154
      // Predicated region
      $region25: #{tpu_custom_call.1} parent=5 // pred_check
        _
      $region26: #{tpu_custom_call.1} parent=5 // pred_check_branch
        %157 = sbr.rel (%p154) target = $region28
      $region27: #{tpu_custom_call.1} parent=5 // pred_region
        %s158 = ssub.s32 %s17, 1
        %s159 = sand.u32 %s30, 1
        %s160 = scalar_lea.sflag [#allocation3], %s159
        %s161 = sand.u32 %s30, 1
        %s162 = smul.addr %s161, 8
        %s163 = scalar_lea.vmem [#allocation2], %s162
        // Predicated region
        $region29: #{tpu_custom_call.1} parent=27 // pred_check
          %p164 = pneg %p43
        $region30: #{tpu_custom_call.1} parent=27 // pred_check_branch
          %166 = sbr.rel (%p164) target = $region32
        $region31: #{tpu_custom_call.1} parent=27 // pred_region
          %167 = dma.done %s160, 128
        $region32: #{tpu_custom_call.1} parent=27 // pred_fallthru
          _
        %s168 = sand.u32 %s56, 1
        %s169 = scalar_lea.sflag [#allocation6], %s168
        %s170 = sand.u32 %s56, 1
        %s171 = smul.addr %s170, 8
        %s172 = scalar_lea.vmem [#allocation5], %s171
        // Predicated region
        $region33: #{tpu_custom_call.1} parent=27 // pred_check
          %p173 = pneg %p69
        $region34: #{tpu_custom_call.1} parent=27 // pred_check_branch
          %175 = sbr.rel (%p173) target = $region36
        $region35: #{tpu_custom_call.1} parent=27 // pred_region
          %176 = dma.done %s169, 128
        $region36: #{tpu_custom_call.1} parent=27 // pred_fallthru
          _
        %s177 = sand.u32 %s30, 1
        %s178 = scalar_lea.sflag [#allocation3], %s177
        %s179 = sand.u32 %s30, 1
        %s180 = smul.addr %s179, 8
        %s181 = scalar_lea.vmem [#allocation2], %s180
        %p182 = pneg %p43
        %p183 = pneg %p40
        %s184 = sand.u32 %s56, 1
        %s185 = scalar_lea.sflag [#allocation6], %s184
        %s186 = sand.u32 %s56, 1
        %s187 = smul.addr %s186, 8
        %s188 = scalar_lea.vmem [#allocation5], %s187
        %p189 = pneg %p69
        %p190 = pneg %p66
        %p191 = pneg %p95
        %p192 = pneg %p92
        %s193 = sand.u32 %s82, 1
        %s194 = scalar_lea.sflag [#allocation4], %s193
        %s195 = sand.u32 %s82, 1
        %s196 = smul.addr %s195, 8
        %s197 = scalar_lea.vmem [#allocation7], %s196
        %v198 = vld [vmem:[%s163] sm:$0xff]
        %v199 = vld [vmem:[%s172] sm:$0xff]
        %v200 = vmul.f32 %v198, 0.5
        %v201 = vmul.f32 %v199, 0.5
        %v203 = vcombine.high %v201, %v201
        %vm205 = vcmask 1043456
        %v206 = vsel %vm205, %v201, -inf
        %v207 = vrot.slane %v206, 4
        %v208 = vmax.f32 %v206, %v207
        %v209 = vrot.slane %v208, 2
        %v210 = vmax.f32 %v208, %v209
        %v211 = vrot.slane %v210, 1
        %v212 = vmax.f32 %v210, %v211
        %v213 = vsel %vm205, %v203, -inf
        %v214 = vrot.slane %v213, 4
        %v215 = vmax.f32 %v213, %v214
        %v216 = vrot.slane %v215, 2
        %v217 = vmax.f32 %v215, %v216
        %v218 = vrot.slane %v217, 1
        %v219 = vmax.f32 %v217, %v218
        %v222 = vcombine.low %v212, %v219
        %v224 = vsub.f32 %v201, %v222
        %v225 = vmul.f32 %v224, 1.442695
        %v226 = vpow.pop %v225
        %v228 = vcombine.high %v226, %v226
        %v230 = vsel %vm205, %v226, 0.0
        %v231 = vrot.slane %v230, 4
        %v232 = vadd.f32 %v230, %v231
        %v233 = vrot.slane %v232, 2
        %v234 = vadd.f32 %v232, %v233
        %v235 = vrot.slane %v234, 1
        %v236 = vadd.f32 %v234, %v235
        %v237 = vsel %vm205, %v228, 0.0
        %v238 = vrot.slane %v237, 4
        %v239 = vadd.f32 %v237, %v238
        %v240 = vrot.slane %v239, 2
        %v241 = vadd.f32 %v239, %v240
        %v242 = vrot.slane %v241, 1
        %v243 = vadd.f32 %v241, %v242
        %v245 = vcombine.high %v200, %v200
        %v247 = vsel %vm205, %v200, -inf
        %v248 = vrot.slane %v247, 4
        %v249 = vmax.f32 %v247, %v248
        %v250 = vrot.slane %v249, 2
        %v251 = vmax.f32 %v249, %v250
        %v252 = vrot.slane %v251, 1
        %v253 = vmax.f32 %v251, %v252
        %v254 = vsel %vm205, %v245, -inf
        %v255 = vrot.slane %v254, 4
        %v256 = vmax.f32 %v254, %v255
        %v257 = vrot.slane %v256, 2
        %v258 = vmax.f32 %v256, %v257
        %v259 = vrot.slane %v258, 1
        %v260 = vmax.f32 %v258, %v259
        %v263 = vcombine.low %v253, %v260
        %v265 = vsub.f32 %v200, %v263
        %v266 = vmul.f32 %v265, 1.442695
        %v267 = vpow.pop %v266
        %v269 = vcombine.high %v267, %v267
        %v271 = vsel %vm205, %v267, 0.0
        %v272 = vrot.slane %v271, 4
        %v273 = vadd.f32 %v271, %v272
        %v274 = vrot.slane %v273, 2
        %v275 = vadd.f32 %v273, %v274
        %v276 = vrot.slane %v275, 1
        %v277 = vadd.f32 %v275, %v276
        %v278 = vsel %vm205, %v269, 0.0
        %v279 = vrot.slane %v278, 4
        %v280 = vadd.f32 %v278, %v279
        %v281 = vrot.slane %v280, 2
        %v282 = vadd.f32 %v280, %v281
        %v283 = vrot.slane %v282, 1
        %v284 = vadd.f32 %v282, %v283
        %v285 = vsub.f32 %v224, %v265
        %v286 = vmul.f32 %v226, %v285
        %v288 = vcombine.high %v286, %v286
        %v290 = vsel %vm205, %v286, 0.0
        %v291 = vrot.slane %v290, 4
        %v292 = vadd.f32 %v290, %v291
        %v293 = vrot.slane %v292, 2
        %v294 = vadd.f32 %v292, %v293
        %v295 = vrot.slane %v294, 1
        %v296 = vadd.f32 %v294, %v295
        %v297 = vsel %vm205, %v288, 0.0
        %v298 = vrot.slane %v297, 4
        %v299 = vadd.f32 %v297, %v298
        %v300 = vrot.slane %v299, 2
        %v301 = vadd.f32 %v299, %v300
        %v302 = vrot.slane %v301, 1
        %v303 = vadd.f32 %v301, %v302
        %v304 = vrcp.pop %v236
        %v305 = vmul.f32 %v296, %v304
        %v306 = vrcp.pop %v243
        %v307 = vmul.f32 %v303, %v306
        %v308 = vlog2.pop %v277
        %v309 = vmul.f32 %v308, 0.6931472
        %v310 = vlog2.pop %v284
        %v311 = vmul.f32 %v310, 0.6931472
        %v312 = vlog2.pop %v236
        %v313 = vmul.f32 %v312, 0.6931472
        %v314 = vlog2.pop %v243
        %v315 = vmul.f32 %v314, 0.6931472
        %v316 = vsub.f32 %v309, %v313
        %v317 = vsub.f32 %v311, %v315
        %v318 = vadd.f32 %v305, %v316
        %v319 = vadd.f32 %v307, %v317
        %vm320 = vcmask 1040384
        %v321 = vsel %vm320, %v318, 0.0
        %v322 = vsel %vm320, %v319, 0.0
        %v323 = vadd.f32 %v321, %v322
        %324 = vadd.xlane.f32.xlu0 %v323
        %v325 = vpop.xlane.xlu0 %324
        %v326 = vrot.slane %v325, 4
        %v327 = vadd.f32 %v325, %v326
        %v328 = vrot.slane %v327, 2
        %v329 = vadd.f32 %v327, %v328
        %v330 = vrot.slane %v329, 1
        %v331 = vadd.f32 %v329, %v330
        %s332 = vtos %v331
        %v333 = vstv %s332
        %334 = vst [vmem:[%s197] sm:$0xff] %v333
        %s335 = sand.u32 %s82, 1
        %s336 = scalar_lea.sflag [#allocation4], %s335
        %s337 = sand.u32 %s82, 1
        %s338 = smul.addr %s337, 8
        %s339 = scalar_lea.vmem [#allocation7], %s338
        // Predicated region
        $region37: #{tpu_custom_call.1} parent=27 // pred_check
          %p340 = pneg %p92
        $region38: #{tpu_custom_call.1} parent=27 // pred_check_branch
          %342 = sbr.rel (%p340) target = $region40
        $region39: #{tpu_custom_call.1} parent=27 // pred_region
          %s344 = ssub.s32 128, 128
          %345 = vsyncadd %s336, %s344
          %s346 = smul.addr %s22, 128
          %s347 = scalar_lea.hbm %s2, %s346
          %s349 = sshll.u32 %s339, 4
          %s350 = int_to_ptr.vmem [resolvable:$true] %s349
          %352 = dma.vmem_to_hbm [thread:$0]  %s350, 128, %s347, %s336
        $region40: #{tpu_custom_call.1} parent=27 // pred_fallthru
          _
      $region28: #{tpu_custom_call.1} parent=5 // pred_fallthru
        _
      %p353 = scmp.le.s32.totalorder 2, %s17
      // Predicated region
      $region41: #{tpu_custom_call.1} parent=5 // pred_check
        %p354 = pneg %p353
      $region42: #{tpu_custom_call.1} parent=5 // pred_check_branch
        %356 = sbr.rel (%p354) target = $region44
      $region43: #{tpu_custom_call.1} parent=5 // pred_region
        %s357 = ssub.s32 %s17, 2
        // Predicated region
        $region45: #{tpu_custom_call.1} parent=43 // pred_check
          %p358 = pneg %p98
        $region46: #{tpu_custom_call.1} parent=43 // pred_check_branch
          %360 = sbr.rel (%p358) target = $region48
        $region47: #{tpu_custom_call.1} parent=43 // pred_region
          %s361 = sand.u32 %s83, 1
          %s362 = scalar_lea.sflag [#allocation4], %s361
          %s363 = sand.u32 %s83, 1
          %s364 = smul.addr %s363, 8
          %s365 = scalar_lea.vmem [#allocation7], %s364
          %366 = dma.done %s362, 128
        $region48: #{tpu_custom_call.1} parent=43 // pred_fallthru
          _
      $region44: #{tpu_custom_call.1} parent=5 // pred_fallthru
        _
    $region6: #{tpu_custom_call.1} parent=1 // loop_footer
      %s21 = sadd.s32 1, %s17
    $region7: #{tpu_custom_call.1} parent=1 // loop_footer_branch
      %16 = sbr.rel target = $region3
    $region8: #{tpu_custom_call.1} parent=1 // loop_exit
      _
    %367 = vsyncpa [#allocation3], 1
    %s368 = scalar_lea.sflag [#allocation3], 1
    %369 = vsyncpa %s368, 1
    %370 = vsyncpa [#allocation6], 1
    %s371 = scalar_lea.sflag [#allocation6], 1
    %372 = vsyncpa %s371, 1
    %373 = vsyncpa [#allocation4], 1
    %s374 = scalar_lea.sflag [#allocation4], 1
    %375 = vsyncpa %s374, 1

</llo_original>
